<compile_context>
chip_gen: v7x
topology: tpu7x:2x2x1
jax: 0.10.0
libtpu: 0.0.40
codegen_flags: <defaults>
</compile_context>

<pallas_src>
import functools
import math

import jax
import jax.numpy as jnp
from jax.experimental import pallas as pl
from jax.experimental.pallas import tpu as pltpu


def _layernorm_kernel(x_ref, gamma_ref, beta_ref, o_ref, *, eps, features):
    # x_ref: (TR, F) tile of rows; gamma/beta: (1, F) already f32.
    x = x_ref[...].astype(jnp.float32)

    n = jnp.float32(features)
    # One-pass statistics: the two lane-axis reductions are independent.
    sum_x = jnp.sum(x, axis=-1, keepdims=True)          # (TR, 1)
    sum_xx = jnp.sum(x * x, axis=-1, keepdims=True)      # (TR, 1)

    mean = sum_x * jnp.float32(1.0 / features)
    # torch.std default: unbiased estimator (divide by N-1).
    var = (sum_xx - n * mean * mean) * jnp.float32(1.0 / (features - 1))
    var = jnp.maximum(var, jnp.float32(0.0))  # guard E[x^2] cancellation
    std = jnp.sqrt(var)

    # Per-row reciprocal on a (TR, 1) column instead of a full-tile divide.
    inv = pl.reciprocal(std + jnp.float32(eps), approx=False)

    gamma = gamma_ref[...]  # (1, F), f32 — broadcasts over rows
    beta = beta_ref[...]

    out = (x - mean) * inv * gamma + beta
    o_ref[...] = out.astype(o_ref.dtype)


def _vmem_limit_bytes():
    """Generation-aware VMEM limit: physical capacity minus headroom, <=96MiB."""
    try:
        cap = int(pltpu.get_tpu_info().vmem_capacity_bytes)
    except Exception:  # query unavailable -> assume v7x's 64 MiB (worst case)
        cap = 64 * 1024 * 1024
    limit = cap - 16 * 1024 * 1024          # headroom for compiler scratch
    limit = min(limit, 96 * 1024 * 1024)     # v5e/v6e: no need for more
    return max(limit, 32 * 1024 * 1024)      # never below 32 MiB


def layer_norm(x, a_2, b_2, eps=1e-6, row_tile=None):
    """x: (..., features); a_2, b_2: (features,)."""
    orig_shape = x.shape
    features = orig_shape[-1]
    if features < 2:
        raise ValueError(
            "features must be >= 2: unbiased std divides by (features - 1)"
        )

    rows = math.prod(orig_shape[:-1]) if len(orig_shape) > 1 else 1
    x2 = x.reshape(rows, features)

    in_bytes = jnp.dtype(x.dtype).itemsize
    out_bytes = in_bytes
    # Sublane packing: 8 rows for 32-bit, 16 for 16-bit, 32 for 8-bit dtypes.
    sublane = 8 if in_bytes >= 4 else (16 if in_bytes == 2 else 32)

    vmem_limit = _vmem_limit_bytes()

    if row_tile is None:
        # Budget ~3/4 of the declared VMEM limit for pipeline buffers plus
        # in-kernel f32 intermediates; the rest is slack for the compiler.
        budget_bytes = max(8 * 1024 * 1024, (vmem_limit * 3) // 4)
        # Per row: double-buffered native-dtype input + output blocks, plus
        # ~3 f32 intermediates (x upcast, x - mean, out) live in the kernel.
        per_row_bytes = 2 * features * (in_bytes + out_bytes) + 3 * features * 4
        tile = max(sublane, budget_bytes // max(per_row_bytes, 1))
        tile = min(tile, 8192)  # diminishing returns past this; keeps DMAs sane

        rows_rounded = ((rows + sublane - 1) // sublane) * sublane
        # Keep the grid at >= ~8 steps when there is enough work so the
        # "parallel" axis can be split across v7x's two TensorCores and the
        # pipeline has multiple steps to overlap.
        min_steps = 8
        if rows_rounded >= min_steps * sublane:
            max_tile_for_steps = max(
                sublane, ((rows_rounded // min_steps) // sublane) * sublane
            )
            tile = min(tile, max_tile_for_steps)
        # No point tiling beyond the (sublane-rounded) number of rows.
        tile = min(tile, rows_rounded)
        row_tile = max(sublane, (tile // sublane) * sublane)

    # Cast parameters once, outside the kernel.
    gamma = a_2.reshape(1, features).astype(jnp.float32)
    beta = b_2.reshape(1, features).astype(jnp.float32)

    kernel = functools.partial(_layernorm_kernel, eps=float(eps), features=features)

    # Ragged last block: OOB rows in the edge input block are garbage that is
    # never written back (Blocked out_spec masks the OOB writeback), and the
    # per-row normalization keeps any NaN/Inf there row-local.
    grid = (pl.cdiv(rows, row_tile),)
    out = pl.pallas_call(
        kernel,
        out_shape=jax.ShapeDtypeStruct((rows, features), x.dtype),
        grid_spec=pltpu.PrefetchScalarGridSpec(
            num_scalar_prefetch=0,
            grid=grid,
            in_specs=[
                pl.BlockSpec((row_tile, features), lambda i: (i, 0)),
                pl.BlockSpec((1, features), lambda i: (0, 0)),
                pl.BlockSpec((1, features), lambda i: (0, 0)),
            ],
            out_specs=pl.BlockSpec((row_tile, features), lambda i: (i, 0)),
        ),
        compiler_params=pltpu.CompilerParams(
            dimension_semantics=("parallel",),
            vmem_limit_bytes=vmem_limit,
        ),
    )(x2, gamma, beta)

    return out.reshape(orig_shape)


if __name__ == "__main__":
    key = jax.random.PRNGKey(0)
    batch, seq, hidden = 2, 8, 32

    x = jax.random.normal(key, (batch, seq, hidden), dtype=jnp.float32)

    # Deterministic parameter init mirroring the module's __init__:
    #   a_2 = ones(features), b_2 = zeros(features)
    a_2 = jnp.ones((hidden,), dtype=jnp.float32)
    b_2 = jnp.zeros((hidden,), dtype=jnp.float32)
    eps = 1e-6

    out = layer_norm(x, a_2, b_2, eps=eps)
    out = jax.block_until_ready(out)

    # Reference check in plain JAX (unbiased std, matching torch.std default).
    mean = jnp.mean(x, axis=-1, keepdims=True)
    std = jnp.std(x, axis=-1, keepdims=True, ddof=1)
    ref = a_2 * (x - mean) / (std + eps) + b_2

    assert out.shape == x.shape
    assert jnp.allclose(out, ref, atol=1e-5, rtol=1e-5)
    print("KERNEL_OK")
</pallas_src>

<mosaic_0001>
module attributes {stable_mosaic.version = 11 : i64} {
  func.func @_layernorm_kernel(%arg0: i32, %arg1: memref<16x32xf32, #tpu.memory_space<vmem>>, %arg2: memref<1x32xf32, #tpu.memory_space<vmem>>, %arg3: memref<1x32xf32, #tpu.memory_space<vmem>>, %arg4: memref<16x32xf32, #tpu.memory_space<vmem>>) attributes {dimension_semantics = [#tpu.dimension_semantics<parallel>], iteration_bounds = array<i64: 1>, scalar_prefetch = 0 : i64, scratch_operands = 0 : i64, tpu.core_type = #tpu.core_type<tc>, window_params = [{transform_indices = @transform_0, window_bounds = array<i64: 16, 32>}, {pipeline_mode = #tpu.pipeline_mode<synchronous>, transform_indices = @transform_1, window_bounds = array<i64: 1, 32>}, {pipeline_mode = #tpu.pipeline_mode<synchronous>, transform_indices = @transform_2, window_bounds = array<i64: 1, 32>}, {transform_indices = @transform_3, window_bounds = array<i64: 16, 32>}]} {
    %c0 = arith.constant 0 : index
    %c0_0 = arith.constant 0 : index
    %0 = vector.load %arg1[%c0, %c0_0] : memref<16x32xf32, #tpu.memory_space<vmem>>, vector<16x32xf32>
    %cst = arith.constant dense<0.000000e+00> : vector<16xf32>
    %1 = vector.multi_reduction <add>, %0, %cst [1] : vector<16x32xf32> to vector<16xf32>
    %2 = vector.shape_cast %1 : vector<16xf32> to vector<16x1xf32>
    %3 = arith.mulf %0, %0 : vector<16x32xf32>
    %cst_1 = arith.constant dense<0.000000e+00> : vector<16xf32>
    %4 = vector.multi_reduction <add>, %3, %cst_1 [1] : vector<16x32xf32> to vector<16xf32>
    %5 = vector.shape_cast %4 : vector<16xf32> to vector<16x1xf32>
    %cst_2 = arith.constant 3.125000e-02 : f32
    %6 = vector.broadcast %cst_2 : f32 to vector<16x1xf32>
    %7 = arith.mulf %2, %6 : vector<16x1xf32>
    %cst_3 = arith.constant 3.200000e+01 : f32
    %8 = vector.broadcast %cst_3 : f32 to vector<16x1xf32>
    %9 = arith.mulf %8, %7 : vector<16x1xf32>
    %10 = arith.mulf %9, %7 : vector<16x1xf32>
    %11 = arith.subf %5, %10 : vector<16x1xf32>
    %cst_4 = arith.constant 0.0322580636 : f32
    %12 = vector.broadcast %cst_4 : f32 to vector<16x1xf32>
    %13 = arith.mulf %11, %12 : vector<16x1xf32>
    %cst_5 = arith.constant 0.000000e+00 : f32
    %14 = vector.broadcast %cst_5 : f32 to vector<16x1xf32>
    %15 = arith.maximumf %13, %14 : vector<16x1xf32>
    %16 = math.sqrt %15 : vector<16x1xf32>
    %cst_6 = arith.constant 9.99999997E-7 : f32
    %17 = vector.broadcast %cst_6 : f32 to vector<16x1xf32>
    %18 = arith.addf %16, %17 : vector<16x1xf32>
    %19 = tpu.reciprocal %18 : vector<16x1xf32> -> vector<16x1xf32>
    %c0_7 = arith.constant 0 : index
    %c0_8 = arith.constant 0 : index
    %20 = vector.load %arg2[%c0_7, %c0_8] : memref<1x32xf32, #tpu.memory_space<vmem>>, vector<1x32xf32>
    %c0_9 = arith.constant 0 : index
    %c0_10 = arith.constant 0 : index
    %21 = vector.load %arg3[%c0_9, %c0_10] : memref<1x32xf32, #tpu.memory_space<vmem>>, vector<1x32xf32>
    %22 = vector.broadcast %7 : vector<16x1xf32> to vector<16x32xf32>
    %23 = arith.subf %0, %22 : vector<16x32xf32>
    %24 = vector.broadcast %19 : vector<16x1xf32> to vector<16x32xf32>
    %25 = arith.mulf %23, %24 : vector<16x32xf32>
    %26 = vector.broadcast %20 : vector<1x32xf32> to vector<16x32xf32>
    %27 = arith.mulf %25, %26 : vector<16x32xf32>
    %28 = vector.broadcast %21 : vector<1x32xf32> to vector<16x32xf32>
    %29 = arith.addf %27, %28 : vector<16x32xf32>
    %c0_11 = arith.constant 0 : index
    %c0_12 = arith.constant 0 : index
    %30 = vector.load %arg4[%c0_11, %c0_12] : memref<16x32xf32, #tpu.memory_space<vmem>>, vector<16x32xf32>
    tpu.vector_store %arg4[%c0_11, %c0_12], %29 {strides = array<i32>} : memref<16x32xf32, #tpu.memory_space<vmem>>, vector<16x32xf32>,
    return
  }
  func.func @transform_0(%arg0: i32) -> (i32, i32) {
    %c0_i32 = arith.constant 0 : i32
    %c0_i32_0 = arith.constant 0 : i32
    return %arg0, %c0_i32 : i32, i32
  }
  func.func @transform_1(%arg0: i32) -> (i32, i32) {
    %c0_i32 = arith.constant 0 : i32
    %c0_i32_0 = arith.constant 0 : i32
    %c0_i32_1 = arith.constant 0 : i32
    return %c0_i32, %c0_i32_0 : i32, i32
  }
  func.func @transform_2(%arg0: i32) -> (i32, i32) {
    %c0_i32 = arith.constant 0 : i32
    %c0_i32_0 = arith.constant 0 : i32
    %c0_i32_1 = arith.constant 0 : i32
    return %c0_i32, %c0_i32_0 : i32, i32
  }
  func.func @transform_3(%arg0: i32) -> (i32, i32) {
    %c0_i32 = arith.constant 0 : i32
    %c0_i32_0 = arith.constant 0 : i32
    return %arg0, %c0_i32 : i32, i32
  }
}

</mosaic_0001>

<llo_original>
// kernel: tpu_custom_call.1
$region0: #{tpu_custom_call.1}
  #allocation0 [shape = 'u32[]', space=smem, size = 0x4, offset = 0x4, fixed_abs, tag = 'smem constant byte address 0x4 - core index']
  #allocation1 [shape = 'u32[144,128]{1,0:T(1,128)}', space=vmem, size = 0x12000, scoped, tag = 'internal scratch']
  %s0 = inlined_call_operand.hbm [shape: f32[16,32], index: 0, kind: input, shape index: {}]
  %s1 = inlined_call_operand.vmem [shape: f32[1,32], index: 1, kind: input, shape index: {}]
  %s2 = inlined_call_operand.vmem [shape: f32[1,32], index: 2, kind: input, shape index: {}]
  %s3 = inlined_call_operand.hbm [shape: f32[16,32], index: 3, kind: output, shape index: {}]
  %s4 = sld [smem:[#allocation0]]
  $region26: #{tpu_custom_call.1} parent=0
    _
  %s6 = ssub.s32 1, %s4
  %s7 = scalar_select 0, %s6, %s4
  $region1: #{tpu_custom_call.1} parent=0
    #allocation2 [shape = 'u8[8192]{0}', space=vmem, size = 0x2000, scoped, tag = 'input window, operand 0, single buffered']
    #allocation3 [shape = 's32[1]{0}', space=sflag, size = 0x4, scoped, tag = 'scoped memory for tpu_custom_call.1']
    #allocation4 [shape = 's32[1]{0}', space=sflag, size = 0x4, scoped, tag = 'scoped memory for tpu_custom_call.1']
    #allocation5 [shape = 'u8[8192]{0}', space=vmem, size = 0x2000, scoped, tag = 'output window, operand 0, single buffered']
    %8 = vsyncpa [#allocation3], 0
    %9 = vsyncpa [#allocation4], 0
    // Predicated region
    $region2: #{tpu_custom_call.1} parent=1 // pred_check
      _
    $region3: #{tpu_custom_call.1} parent=1 // pred_check_branch
      %11 = sbr.rel (0) target = $region5
    $region4: #{tpu_custom_call.1} parent=1 // pred_region
      %s13 = ssub.s32 256, 256
      %14 = vsyncadd [#allocation3], %s13
      %s15 = sshll.u32 [#allocation2], 4
      %s16 = int_to_ptr.vmem [resolvable:$true] %s15
      %21 = dma.hbm_to_vmem [thread:$0]  %s0, 256, %s16, [#allocation3], 128, 128, 8
    $region5: #{tpu_custom_call.1} parent=1 // pred_fallthru
      _
    // Predicated region
    $region6: #{tpu_custom_call.1} parent=1 // pred_check
      _
    $region7: #{tpu_custom_call.1} parent=1 // pred_check_branch
      %23 = sbr.rel (0) target = $region9
    $region8: #{tpu_custom_call.1} parent=1 // pred_region
      _
    $region9: #{tpu_custom_call.1} parent=1 // pred_fallthru
      _
    // Predicated region
    $region10: #{tpu_custom_call.1} parent=1 // pred_check
      _
    $region11: #{tpu_custom_call.1} parent=1 // pred_check_branch
      %25 = sbr.rel (0) target = $region13
    $region12: #{tpu_custom_call.1} parent=1 // pred_region
      _
    $region13: #{tpu_custom_call.1} parent=1 // pred_fallthru
      _
    // Predicated region
    $region14: #{tpu_custom_call.1} parent=1 // pred_check
      _
    $region15: #{tpu_custom_call.1} parent=1 // pred_check_branch
      %27 = sbr.rel (0) target = $region17
    $region16: #{tpu_custom_call.1} parent=1 // pred_region
      %28 = dma.done [#allocation3], 256
    $region17: #{tpu_custom_call.1} parent=1 // pred_fallthru
      _
    %v29 = vld [vmem:[#allocation2] sm:$0xff]
    %v30 = vld [vmem:[#allocation2 + $0x8] sm:$0xff]
    %vm31 = vcmask 261120
    %v32 = vsel %vm31, %v29, 0.0
    %33 = vadd.xlane.f32.xlu0 %v32
    %v34 = vpop.xlane.xlu0 %33
    %v35 = vsel %vm31, %v30, 0.0
    %36 = vadd.xlane.f32.xlu0 %v35
    %v37 = vpop.xlane.xlu0 %36
    %v38 = vmul.f32 %v29, %v29
    %v39 = vmul.f32 %v30, %v30
    %v40 = vsel %vm31, %v38, 0.0
    %41 = vadd.xlane.f32.xlu0 %v40
    %v42 = vpop.xlane.xlu0 %41
    %v43 = vsel %vm31, %v39, 0.0
    %44 = vadd.xlane.f32.xlu0 %v43
    %v45 = vpop.xlane.xlu0 %44
    %v46 = vmul.f32 %v34, 0.03125
    %v47 = vmul.f32 %v37, 0.03125
    %v48 = vmul.f32 %v46, 32.0
    %v49 = vmul.f32 %v47, 32.0
    %v50 = vmul.f32 %v48, %v46
    %v51 = vmul.f32 %v49, %v47
    %v52 = vsub.f32 %v42, %v50
    %v53 = vsub.f32 %v45, %v51
    %v54 = vmul.f32 %v52, 0.032258064
    %v55 = vmul.f32 %v53, 0.032258064
    %v56 = vmax.f32 %v54, 0.0
    %v57 = vmax.f32 %v55, 0.0
    %v58 = vrsqrt.pop %v56
    %v59 = vmul.f32 %v56, %v58
    %vm60 = vcmp.eq.f32.partialorder %v56, inf
    %v61 = vsel %vm60, %v56, %v59
    %vm62 = vcmp.eq.f32.partialorder %v56, 0.0
    %v63 = vand.u32 %v56, 2147483648
    %v64 = vsel %vm62, %v63, %v61
    %v65 = vrsqrt.pop %v57
    %v66 = vmul.f32 %v57, %v65
    %vm67 = vcmp.eq.f32.partialorder %v57, inf
    %v68 = vsel %vm67, %v57, %v66
    %vm69 = vcmp.eq.f32.partialorder %v57, 0.0
    %v70 = vand.u32 %v57, 2147483648
    %v71 = vsel %vm69, %v70, %v68
    %v72 = vadd.f32 %v64, 1e-06
    %v73 = vadd.f32 %v71, 1e-06
    %v74 = vrcp.pop %v72
    %v75 = vrcp.pop %v73
    %v76 = vld [vmem:[%s1] sm:$0x1]
    %v77 = vld [vmem:[%s2] sm:$0x1]
    %v78 = vsub.f32 %v29, %v46
    %v79 = vsub.f32 %v30, %v47
    %v80 = vmul.f32 %v78, %v74
    %v81 = vmul.f32 %v79, %v75
    %v83 = vlaneseq
    %v84 = vshrl.u32 %v83, 7
    %v85 = vsub.s32 0, %v84
    %v86 = vrot.slane %v76, %v85
    %v88 = vmul.f32 %v80, %v86
    %v89 = vmul.f32 %v81, %v86
    %v91 = vlaneseq
    %v92 = vshrl.u32 %v91, 7
    %v93 = vsub.s32 0, %v92
    %v94 = vrot.slane %v77, %v93
    %v96 = vadd.f32 %v88, %v94
    %v97 = vadd.f32 %v89, %v94
    %98 = vst.msk [vmem:[#allocation5] sm:$0xff] %vm31, %v96
    %99 = vst.msk [vmem:[#allocation5 + $0x8] sm:$0xff] %vm31, %v97
    // Predicated region
    $region18: #{tpu_custom_call.1} parent=1 // pred_check
      _
    $region19: #{tpu_custom_call.1} parent=1 // pred_check_branch
      %101 = sbr.rel (0) target = $region21
    $region20: #{tpu_custom_call.1} parent=1 // pred_region
      %s103 = ssub.s32 256, 256
      %104 = vsyncadd [#allocation4], %s103
      %s105 = sshll.u32 [#allocation5], 4
      %s106 = int_to_ptr.vmem [resolvable:$true] %s105
      %111 = dma.vmem_to_hbm [thread:$0]  %s106, 256, %s3, [#allocation4], 128, 128, 8
    $region21: #{tpu_custom_call.1} parent=1 // pred_fallthru
      _
    // Predicated region
    $region22: #{tpu_custom_call.1} parent=1 // pred_check
      _
    $region23: #{tpu_custom_call.1} parent=1 // pred_check_branch
      %113 = sbr.rel (0) target = $region25
    $region24: #{tpu_custom_call.1} parent=1 // pred_region
      %114 = dma.done [#allocation4], 256
    $region25: #{tpu_custom_call.1} parent=1 // pred_fallthru
      _
    %115 = vsyncpa [#allocation3], 1
    %116 = vsyncpa [#allocation4], 1

</llo_original>
